<compile_context>
chip_gen: v6e
topology: v6e:2x2x1
jax: 0.10.0
libtpu: 0.0.40
codegen_flags: <defaults>
</compile_context>

<pallas_src>
import functools

import jax
import jax.numpy as jnp
from jax.experimental import pallas as pl
from jax.experimental.pallas import tpu as pltpu


def _cdiv(a, b):
    return -(-a // b)


# ---------------------------------------------------------------------------
# Kernels
# ---------------------------------------------------------------------------
def _loss_kernel_se(pred_ref, gt_ref, mask_ref, po_ref, off_ref, ow_ref,
                    out_ref, hm_acc, off_acc, npos_acc, *, beta):
    """supervise_empty=True: channel-combined streaming accumulation."""
    j = pl.program_id(2)

    @pl.when(j == 0)
    def _():
        hm_acc[...] = jnp.zeros_like(hm_acc)
        off_acc[...] = jnp.zeros_like(off_acc)
        npos_acc[...] = jnp.zeros_like(npos_acc)

    pred = pred_ref[0].astype(jnp.float32)        # (K, 8, T)
    gt = gt_ref[0].astype(jnp.float32)            # (K, 8, T)
    m = mask_ref[0, 0].astype(jnp.float32)        # (8, T)
    diff = pred - gt
    # mask is shared across channels -> channel-reduce first, one mask mul.
    hm_acc[...] += jnp.sum(diff * diff, axis=0) * m

    po = po_ref[0].astype(jnp.float32)            # (C, 8, T)
    off = off_ref[0].astype(jnp.float32)
    ow = ow_ref[0].astype(jnp.float32)
    l1 = jnp.abs(po - off)
    sl1 = jnp.where(l1 < beta, (0.5 / beta) * l1 * l1, l1 - 0.5 * beta)
    off_acc[...] += jnp.sum(sl1 * ow, axis=0)
    npos_acc[...] += jnp.sum(jnp.where(ow > 0.0, 1.0, 0.0), axis=0)

    @pl.when(j == pl.num_programs(2) - 1)
    def _():
        hm_t = jnp.sum(hm_acc[...])
        off_t = jnp.sum(off_acc[...])
        np_t = jnp.sum(npos_acc[...])
        rows = jax.lax.broadcasted_iota(jnp.int32, out_ref.shape, 2)
        out_ref[...] = (jnp.where(rows == 0, hm_t, 0.0)
                        + jnp.where(rows == 1, off_t, 0.0)
                        + jnp.where(rows == 2, np_t, 0.0))


def _loss_kernel_ne(pred_ref, gt_ref, mask_ref, po_ref, off_ref, ow_ref,
                    out_ref, hmch_out_ref, gtch_out_ref,
                    hm_ch_acc, gt_ch_acc, off_acc, npos_acc, *, beta):
    """supervise_empty=False: per-channel accumulation; the emptiness mask is
    applied in the wrapper from the full-HW per-channel gt sums (correct even
    when the HW reduction is split across TensorCores)."""
    j = pl.program_id(2)

    @pl.when(j == 0)
    def _():
        hm_ch_acc[...] = jnp.zeros_like(hm_ch_acc)
        gt_ch_acc[...] = jnp.zeros_like(gt_ch_acc)
        off_acc[...] = jnp.zeros_like(off_acc)
        npos_acc[...] = jnp.zeros_like(npos_acc)

    pred = pred_ref[0].astype(jnp.float32)        # (K, 8, T)
    gt = gt_ref[0].astype(jnp.float32)            # (K, 8, T)
    m = mask_ref[0].astype(jnp.float32)           # (1, 8, T)
    diff = pred - gt
    hm_ch_acc[...] += diff * diff * m             # masked squares per channel
    gt_ch_acc[...] += gt                          # per-channel gt sums

    po = po_ref[0].astype(jnp.float32)            # (C, 8, T)
    off = off_ref[0].astype(jnp.float32)
    ow = ow_ref[0].astype(jnp.float32)
    l1 = jnp.abs(po - off)
    sl1 = jnp.where(l1 < beta, (0.5 / beta) * l1 * l1, l1 - 0.5 * beta)
    off_acc[...] += jnp.sum(sl1 * ow, axis=0)
    npos_acc[...] += jnp.sum(jnp.where(ow > 0.0, 1.0, 0.0), axis=0)

    @pl.when(j == pl.num_programs(2) - 1)
    def _():
        k = hm_ch_acc.shape[0]
        # Static unroll over channels: scalar reduce + lane-broadcast row.
        for ch in range(k):
            hmch_out_ref[0, 0, ch:ch + 1, :] = jnp.full(
                (1, 128), jnp.sum(hm_ch_acc[ch]), jnp.float32)
            gtch_out_ref[0, 0, ch:ch + 1, :] = jnp.full(
                (1, 128), jnp.sum(gt_ch_acc[ch]), jnp.float32)
        off_t = jnp.sum(off_acc[...])
        np_t = jnp.sum(npos_acc[...])
        rows = jax.lax.broadcasted_iota(jnp.int32, out_ref.shape, 2)
        out_ref[...] = (jnp.where(rows == 1, off_t, 0.0)
                        + jnp.where(rows == 2, np_t, 0.0))


# ---------------------------------------------------------------------------
# Tiling plan
# ---------------------------------------------------------------------------
def _plan_tiling(hw, per_hw_bytes, acc_rows, *, budget_bytes=20 * 1024 * 1024,
                 max_t8=16384):
    """Pick (lane_tile, padded_hw, steps_per_split, n_split).

    Each grid step streams 8*lane_tile HW positions per channel.  lane_tile is
    sized so (double-buffered inputs + f32 accumulators) fit `budget_bytes`.
    Exact (pad-free) tilings are preferred; otherwise HW is zero-padded up to
    the tile grid (numerically safe: mask / offset_w padding is zero).
    """
    per_col = 2 * 8 * per_hw_bytes + acc_rows * 8 * 4
    cap = max(128, (min(budget_bytes // per_col, max_t8) // 128) * 128)

    if hw % (8 * 128) == 0:
        hw8 = hw // 8
        t_any = t_even = 0
        t = min(cap, (hw8 // 128) * 128)
        while t >= 128:
            if hw8 % t == 0:
                if t_any == 0:
                    t_any = t
                if t_even == 0 and (hw8 // t) % 2 == 0:
                    t_even = t
                    break
            t -= 128
        if t_even and (t_even == t_any or t_even >= 1024):
            return t_even, hw, (hw // (8 * t_even)) // 2, 2
        if t_any:
            steps = hw // (8 * t_any)
            if steps % 2 == 0:
                return t_any, hw, steps // 2, 2
            return t_any, hw, steps, 1  # odd steps: keep big tile, no split

    # Padded fallback: always core-split by 2.
    n_split = 2
    nblk = max(n_split, _cdiv(hw, 8 * cap))
    nblk = _cdiv(nblk, n_split) * n_split
    t8 = max(128, _cdiv(_cdiv(hw, 8 * nblk), 128) * 128)
    return t8, nblk * 8 * t8, nblk // n_split, n_split


# ---------------------------------------------------------------------------
# Wrapper
# ---------------------------------------------------------------------------
def multi_loss_factory_adaptive(output, poffset, heatmap, mask, offset,
                                offset_w, *,
                                heatmaps_loss_factor=1.0,
                                offset_loss_factor=1.0,
                                supervise_empty=True):
    """Pallas implementation of MultiLossFactoryAdaptive.forward.

    Args (PyTorch NCHW conventions):
      output, heatmap : (N, K, H, W)  predicted / target heatmaps
      mask            : (N, H, W)     valid-region mask
      poffset, offset : (N, C, H, W)  predicted / target offsets (C = 2K)
      offset_w        : (N, C, H, W)  offset weights
    Returns:
      heatmap_loss : (N,)  per-image masked MSE * heatmaps_loss_factor
      offset_loss  : ()    scalar weighted smooth-L1 * offset_loss_factor
    """
    n, k, h, w = output.shape
    c = poffset.shape[1]
    hw = h * w

    itemsize = max(jnp.dtype(x.dtype).itemsize
                   for x in (output, heatmap, mask, poffset, offset, offset_w))
    per_hw_bytes = (2 * k + 3 * c + 1) * itemsize
    acc_rows = 3 if supervise_empty else (2 * k + 2)
    t8, hw_p, n_hw, n_split = _plan_tiling(hw, per_hw_bytes, acc_rows)
    nblk = n_split * n_hw

    # Fold HW into (rows-of-8, lanes): every tensor uses the same bijection,
    # so the elementwise losses are unchanged. Inputs keep their native dtype
    # across the pallas_call boundary; the kernel casts per tile to f32.
    def fold(x, ch):
        x = x.reshape(n, ch, hw)
        if hw_p != hw:
            x = jnp.pad(x, ((0, 0), (0, 0), (0, hw_p - hw)))
        return x.reshape(n, ch, nblk * 8, t8)

    pred = fold(output, k)
    gt = fold(heatmap, k)
    msk = fold(mask, 1)
    po = fold(poffset, c)
    off = fold(offset, c)
    ow = fold(offset_w, c)

    def data_map(ci, i, j):
        return (i, 0, ci * n_hw + j, 0)

    def out_map(ci, i, j):
        return (ci, i, 0, 0)

    in_specs = [
        pl.BlockSpec((1, k, 8, t8), data_map),
        pl.BlockSpec((1, k, 8, t8), data_map),
        pl.BlockSpec((1, 1, 8, t8), data_map),
        pl.BlockSpec((1, c, 8, t8), data_map),
        pl.BlockSpec((1, c, 8, t8), data_map),
        pl.BlockSpec((1, c, 8, t8), data_map),
    ]
    beta = 1.0 / 9.0

    if supervise_empty:
        out_shape = jax.ShapeDtypeStruct((n_split, n, 8, 128), jnp.float32)
        out_specs = pl.BlockSpec((1, 1, 8, 128), out_map)
        scratch = [pltpu.VMEM((8, t8), jnp.float32),
                   pltpu.VMEM((8, t8), jnp.float32),
                   pltpu.VMEM((8, t8), jnp.float32)]
        kernel = functools.partial(_loss_kernel_se, beta=beta)
    else:
        out_shape = (
            jax.ShapeDtypeStruct((n_split, n, 8, 128), jnp.float32),
            jax.ShapeDtypeStruct((n_split, n, k, 128), jnp.float32),
            jax.ShapeDtypeStruct((n_split, n, k, 128), jnp.float32),
        )
        out_specs = (
            pl.BlockSpec((1, 1, 8, 128), out_map),
            pl.BlockSpec((1, 1, k, 128), out_map),
            pl.BlockSpec((1, 1, k, 128), out_map),
        )
        scratch = [pltpu.VMEM((k, 8, t8), jnp.float32),
                   pltpu.VMEM((k, 8, t8), jnp.float32),
                   pltpu.VMEM((8, t8), jnp.float32),
                   pltpu.VMEM((8, t8), jnp.float32)]
        kernel = functools.partial(_loss_kernel_ne, beta=beta)

    results = pl.pallas_call(
        kernel,
        out_shape=out_shape,
        grid_spec=pltpu.PrefetchScalarGridSpec(
            num_scalar_prefetch=0,
            grid=(n_split, n, n_hw),
            in_specs=in_specs,
            out_specs=out_specs,
            scratch_shapes=scratch,
        ),
        compiler_params=pltpu.CompilerParams(
            dimension_semantics=("parallel", "parallel", "arbitrary"),
            vmem_limit_bytes=40 * 1024 * 1024,
        ),
    )(pred, gt, msk, po, off, ow)

    inv_khw = 1.0 / float(k * hw)
    if supervise_empty:
        main = results
        hm_loss = (jnp.sum(main[:, :, 0, 0], axis=0)
                   * (heatmaps_loss_factor * inv_khw))            # (N,)
    else:
        main, hm_chan, gt_chan = results
        hm_chan = jnp.sum(hm_chan[:, :, :, 0], axis=0)            # (N, K)
        gt_chan = jnp.sum(gt_chan[:, :, :, 0], axis=0)            # (N, K)
        empty = (gt_chan > 0.0).astype(jnp.float32)               # full-HW sum
        hm_loss = (jnp.sum(hm_chan * empty, axis=1)
                   * (heatmaps_loss_factor * inv_khw))            # (N,)

    off_total = jnp.sum(main[:, :, 1, 0])
    num_pos = jnp.sum(main[:, :, 2, 0])
    denom = jnp.where(num_pos == 0.0, 1.0, num_pos)
    offset_loss = off_total / denom * offset_loss_factor          # scalar
    return hm_loss, offset_loss


# ---------------------------------------------------------------------------
# Pure-JAX reference (mirrors PyTorch semantics)
# ---------------------------------------------------------------------------
def _reference(output, poffset, heatmap, mask, offset, offset_w,
               heatmaps_loss_factor=1.0, offset_loss_factor=1.0,
               supervise_empty=True):
    output = output.astype(jnp.float32)
    heatmap = heatmap.astype(jnp.float32)
    mask = mask.astype(jnp.float32)
    poffset = poffset.astype(jnp.float32)
    offset = offset.astype(jnp.float32)
    offset_w = offset_w.astype(jnp.float32)

    sq = (output - heatmap) ** 2
    if not supervise_empty:
        empty = (heatmap.sum(axis=(2, 3), keepdims=True) > 0).astype(sq.dtype)
        sq = sq * empty
    loss = sq * mask[:, None, :, :]
    hm = loss.mean(axis=3).mean(axis=2).mean(axis=1) * heatmaps_loss_factor

    beta = 1.0 / 9.0
    l1 = jnp.abs(poffset - offset)
    sl1 = jnp.where(l1 < beta, 0.5 * l1 ** 2 / beta, l1 - 0.5 * beta)
    num_pos = jnp.sum(offset_w > 0).astype(jnp.float32)
    denom = jnp.where(num_pos == 0, 1.0, num_pos)
    off = jnp.sum(sl1 * offset_w) / denom * offset_loss_factor
    return hm, off


# ---------------------------------------------------------------------------
# Test driver
# ---------------------------------------------------------------------------
def _run_case(key, n, k, h, w, supervise_empty, make_empty_channel=False):
    c = 2 * k
    k1, k2, k3, k4, k5, k6 = jax.random.split(key, 6)
    output = jax.random.normal(k1, (n, k, h, w), jnp.float32)
    heatmap = jax.random.uniform(k2, (n, k, h, w), jnp.float32)
    if make_empty_channel:
        heatmap = heatmap.at[0, 1].set(0.0)   # exercise the empty-channel path
    mask = (jax.random.uniform(k3, (n, h, w)) > 0.3).astype(jnp.float32)
    poffset = jax.random.normal(k4, (n, c, h, w), jnp.float32)
    offset = jax.random.normal(k5, (n, c, h, w), jnp.float32)
    offset_w = (jax.random.uniform(k6, (n, c, h, w)) > 0.5).astype(jnp.float32)

    hm_factor, off_factor = 1.0, 0.25
    hm_loss, off_loss = multi_loss_factory_adaptive(
        output, poffset, heatmap, mask, offset, offset_w,
        heatmaps_loss_factor=hm_factor, offset_loss_factor=off_factor,
        supervise_empty=supervise_empty)
    jax.block_until_ready((hm_loss, off_loss))

    hm_ref, off_ref = _reference(
        output, poffset, heatmap, mask, offset, offset_w,
        hm_factor, off_factor, supervise_empty=supervise_empty)
    assert jnp.allclose(hm_loss, hm_ref, rtol=1e-4, atol=1e-5), (
        supervise_empty, h, w, hm_loss, hm_ref)
    assert jnp.allclose(off_loss, off_ref, rtol=1e-4, atol=1e-5), (
        supervise_empty, h, w, off_loss, off_ref)


if __name__ == "__main__":
    key = jax.random.PRNGKey(0)
    k1, k2, k3, k4 = jax.random.split(key, 4)

    # padded-HW path (16x16 -> padded tile grid), core-split=2
    _run_case(k1, 2, 4, 16, 16, supervise_empty=True)
    _run_case(k2, 2, 4, 16, 16, supervise_empty=False, make_empty_channel=True)
    # exact (pad-free) path (32x32), single split
    _run_case(k3, 2, 4, 32, 32, supervise_empty=True)
    _run_case(k4, 2, 4, 32, 32, supervise_empty=False, make_empty_channel=True)

    # TODO(synk): AELoss (associative embedding push/pull) is constructed in
    # __init__ but never called in MultiLossFactoryAdaptive.forward; its
    # data-dependent per-person joint gather has no static-shape Pallas
    # equivalent and is intentionally not implemented.
    print("KERNEL_OK")
</pallas_src>

<mosaic_0001>
module attributes {stable_mosaic.version = 11 : i64} {
  func.func @_loss_kernel_se(%arg0: i32, %arg1: i32, %arg2: i32, %arg3: memref<1x4x8x128xf32, #tpu.memory_space<vmem>>, %arg4: memref<1x4x8x128xf32, #tpu.memory_space<vmem>>, %arg5: memref<1x1x8x128xf32, #tpu.memory_space<vmem>>, %arg6: memref<1x8x8x128xf32, #tpu.memory_space<vmem>>, %arg7: memref<1x8x8x128xf32, #tpu.memory_space<vmem>>, %arg8: memref<1x8x8x128xf32, #tpu.memory_space<vmem>>, %arg9: memref<1x1x8x128xf32, #tpu.memory_space<vmem>>, %arg10: memref<8x128xf32, #tpu.memory_space<vmem>>, %arg11: memref<8x128xf32, #tpu.memory_space<vmem>>, %arg12: memref<8x128xf32, #tpu.memory_space<vmem>>) attributes {dimension_semantics = [#tpu.dimension_semantics<parallel>, #tpu.dimension_semantics<parallel>, #tpu.dimension_semantics<arbitrary>], iteration_bounds = array<i64: 2, 2, 1>, scalar_prefetch = 0 : i64, scratch_operands = 3 : i64, tpu.core_type = #tpu.core_type<tc>, window_params = [{transform_indices = @transform_0, window_bounds = array<i64: 1, 4, 8, 128>}, {transform_indices = @transform_1, window_bounds = array<i64: 1, 4, 8, 128>}, {transform_indices = @transform_2, window_bounds = array<i64: 1, 1, 8, 128>}, {transform_indices = @transform_3, window_bounds = array<i64: 1, 8, 8, 128>}, {transform_indices = @transform_4, window_bounds = array<i64: 1, 8, 8, 128>}, {transform_indices = @transform_5, window_bounds = array<i64: 1, 8, 8, 128>}, {transform_indices = @transform_6, window_bounds = array<i64: 1, 1, 8, 128>}]} {
    %c0_i32 = arith.constant 0 : i32
    %0 = arith.cmpi eq, %arg2, %c0_i32 : i32
    %1 = arith.extui %0 : i1 to i32
    %c0_i32_0 = arith.constant 0 : i32
    %2 = arith.cmpi ne, %1, %c0_i32_0 : i32
    scf.if %2 {
      %cst_46 = arith.constant 0.000000e+00 : f32
      %49 = vector.broadcast %cst_46 : f32 to vector<8x128xf32>
      %c0_47 = arith.constant 0 : index
      %c0_48 = arith.constant 0 : index
      %50 = vector.load %arg10[%c0_47, %c0_48] : memref<8x128xf32, #tpu.memory_space<vmem>>, vector<8x128xf32>
      tpu.vector_store %arg10[%c0_47, %c0_48], %49 {strides = array<i32>} : memref<8x128xf32, #tpu.memory_space<vmem>>, vector<8x128xf32>,
      %cst_49 = arith.constant 0.000000e+00 : f32
      %51 = vector.broadcast %cst_49 : f32 to vector<8x128xf32>
      %c0_50 = arith.constant 0 : index
      %c0_51 = arith.constant 0 : index
      %52 = vector.load %arg11[%c0_50, %c0_51] : memref<8x128xf32, #tpu.memory_space<vmem>>, vector<8x128xf32>
      tpu.vector_store %arg11[%c0_50, %c0_51], %51 {strides = array<i32>} : memref<8x128xf32, #tpu.memory_space<vmem>>, vector<8x128xf32>,
      %cst_52 = arith.constant 0.000000e+00 : f32
      %53 = vector.broadcast %cst_52 : f32 to vector<8x128xf32>
      %c0_53 = arith.constant 0 : index
      %c0_54 = arith.constant 0 : index
      %54 = vector.load %arg12[%c0_53, %c0_54] : memref<8x128xf32, #tpu.memory_space<vmem>>, vector<8x128xf32>
      tpu.vector_store %arg12[%c0_53, %c0_54], %53 {strides = array<i32>} : memref<8x128xf32, #tpu.memory_space<vmem>>, vector<8x128xf32>,
    } else {
    }
    %c0 = arith.constant 0 : index
    %c0_1 = arith.constant 0 : index
    %c0_2 = arith.constant 0 : index
    %c0_3 = arith.constant 0 : index
    %3 = vector.load %arg3[%c0, %c0_1, %c0_2, %c0_3] : memref<1x4x8x128xf32, #tpu.memory_space<vmem>>, vector<1x4x8x128xf32>
    %4 = vector.shape_cast %3 : vector<1x4x8x128xf32> to vector<4x8x128xf32>
    %c0_4 = arith.constant 0 : index
    %c0_5 = arith.constant 0 : index
    %c0_6 = arith.constant 0 : index
    %c0_7 = arith.constant 0 : index
    %5 = vector.load %arg4[%c0_4, %c0_5, %c0_6, %c0_7] : memref<1x4x8x128xf32, #tpu.memory_space<vmem>>, vector<1x4x8x128xf32>
    %6 = vector.shape_cast %5 : vector<1x4x8x128xf32> to vector<4x8x128xf32>
    %c0_8 = arith.constant 0 : index
    %c0_9 = arith.constant 0 : index
    %c0_10 = arith.constant 0 : index
    %c0_11 = arith.constant 0 : index
    %7 = vector.load %arg5[%c0_8, %c0_9, %c0_10, %c0_11] : memref<1x1x8x128xf32, #tpu.memory_space<vmem>>, vector<1x1x8x128xf32>
    %8 = vector.shape_cast %7 : vector<1x1x8x128xf32> to vector<8x128xf32>
    %9 = arith.subf %4, %6 : vector<4x8x128xf32>
    %c0_12 = arith.constant 0 : index
    %c0_13 = arith.constant 0 : index
    %10 = vector.load %arg10[%c0_12, %c0_13] : memref<8x128xf32, #tpu.memory_space<vmem>>, vector<8x128xf32>
    %11 = arith.mulf %9, %9 : vector<4x8x128xf32>
    %cst = arith.constant dense<0.000000e+00> : vector<8x128xf32>
    %12 = vector.multi_reduction <add>, %11, %cst [0] : vector<4x8x128xf32> to vector<8x128xf32>
    %13 = arith.mulf %12, %8 : vector<8x128xf32>
    %14 = arith.addf %10, %13 : vector<8x128xf32>
    %c0_14 = arith.constant 0 : index
    %c0_15 = arith.constant 0 : index
    %15 = vector.load %arg10[%c0_14, %c0_15] : memref<8x128xf32, #tpu.memory_space<vmem>>, vector<8x128xf32>
    tpu.vector_store %arg10[%c0_14, %c0_15], %14 {strides = array<i32>} : memref<8x128xf32, #tpu.memory_space<vmem>>, vector<8x128xf32>,
    %c0_16 = arith.constant 0 : index
    %c0_17 = arith.constant 0 : index
    %c0_18 = arith.constant 0 : index
    %c0_19 = arith.constant 0 : index
    %16 = vector.load %arg6[%c0_16, %c0_17, %c0_18, %c0_19] : memref<1x8x8x128xf32, #tpu.memory_space<vmem>>, vector<1x8x8x128xf32>
    %17 = vector.shape_cast %16 : vector<1x8x8x128xf32> to vector<8x8x128xf32>
    %c0_20 = arith.constant 0 : index
    %c0_21 = arith.constant 0 : index
    %c0_22 = arith.constant 0 : index
    %c0_23 = arith.constant 0 : index
    %18 = vector.load %arg7[%c0_20, %c0_21, %c0_22, %c0_23] : memref<1x8x8x128xf32, #tpu.memory_space<vmem>>, vector<1x8x8x128xf32>
    %19 = vector.shape_cast %18 : vector<1x8x8x128xf32> to vector<8x8x128xf32>
    %c0_24 = arith.constant 0 : index
    %c0_25 = arith.constant 0 : index
    %c0_26 = arith.constant 0 : index
    %c0_27 = arith.constant 0 : index
    %20 = vector.load %arg8[%c0_24, %c0_25, %c0_26, %c0_27] : memref<1x8x8x128xf32, #tpu.memory_space<vmem>>, vector<1x8x8x128xf32>
    %21 = vector.shape_cast %20 : vector<1x8x8x128xf32> to vector<8x8x128xf32>
    %22 = arith.subf %17, %19 : vector<8x8x128xf32>
    %23 = math.absf %22 : vector<8x8x128xf32>
    %cst_28 = arith.constant 0.111111112 : f32
    %24 = vector.broadcast %cst_28 : f32 to vector<8x8x128xf32>
    %25 = arith.cmpf olt, %23, %24 : vector<8x8x128xf32>
    %cst_29 = arith.constant 4.500000e+00 : f32
    %26 = vector.broadcast %cst_29 : f32 to vector<8x8x128xf32>
    %27 = arith.mulf %26, %23 : vector<8x8x128xf32>
    %28 = arith.mulf %27, %23 : vector<8x8x128xf32>
    %cst_30 = arith.constant 0.055555556 : f32
    %29 = vector.broadcast %cst_30 : f32 to vector<8x8x128xf32>
    %30 = arith.subf %23, %29 : vector<8x8x128xf32>
    %31 = arith.select %25, %28, %30 : vector<8x8x128xi1>, vector<8x8x128xf32>
    %c0_31 = arith.constant 0 : index
    %c0_32 = arith.constant 0 : index
    %32 = vector.load %arg11[%c0_31, %c0_32] : memref<8x128xf32, #tpu.memory_space<vmem>>, vector<8x128xf32>
    %33 = arith.mulf %31, %21 : vector<8x8x128xf32>
    %cst_33 = arith.constant dense<0.000000e+00> : vector<8x128xf32>
    %34 = vector.multi_reduction <add>, %33, %cst_33 [0] : vector<8x8x128xf32> to vector<8x128xf32>
    %35 = arith.addf %32, %34 : vector<8x128xf32>
    %c0_34 = arith.constant 0 : index
    %c0_35 = arith.constant 0 : index
    %36 = vector.load %arg11[%c0_34, %c0_35] : memref<8x128xf32, #tpu.memory_space<vmem>>, vector<8x128xf32>
    tpu.vector_store %arg11[%c0_34, %c0_35], %35 {strides = array<i32>} : memref<8x128xf32, #tpu.memory_space<vmem>>, vector<8x128xf32>,
    %c0_36 = arith.constant 0 : index
    %c0_37 = arith.constant 0 : index
    %37 = vector.load %arg12[%c0_36, %c0_37] : memref<8x128xf32, #tpu.memory_space<vmem>>, vector<8x128xf32>
    %cst_38 = arith.constant 0.000000e+00 : f32
    %38 = vector.broadcast %cst_38 : f32 to vector<8x8x128xf32>
    %39 = arith.cmpf ogt, %21, %38 : vector<8x8x128xf32>
    %cst_39 = arith.constant 1.000000e+00 : f32
    %cst_40 = arith.constant 0.000000e+00 : f32
    %40 = vector.broadcast %cst_39 : f32 to vector<8x8x128xf32>
    %41 = vector.broadcast %cst_40 : f32 to vector<8x8x128xf32>
    %42 = arith.select %39, %40, %41 : vector<8x8x128xi1>, vector<8x8x128xf32>
    %cst_41 = arith.constant dense<0.000000e+00> : vector<8x128xf32>
    %43 = vector.multi_reduction <add>, %42, %cst_41 [0] : vector<8x8x128xf32> to vector<8x128xf32>
    %44 = arith.addf %37, %43 : vector<8x128xf32>
    %c0_42 = arith.constant 0 : index
    %c0_43 = arith.constant 0 : index
    %45 = vector.load %arg12[%c0_42, %c0_43] : memref<8x128xf32, #tpu.memory_space<vmem>>, vector<8x128xf32>
    tpu.vector_store %arg12[%c0_42, %c0_43], %44 {strides = array<i32>} : memref<8x128xf32, #tpu.memory_space<vmem>>, vector<8x128xf32>,
    %c0_i32_44 = arith.constant 0 : i32
    %46 = arith.cmpi eq, %arg2, %c0_i32_44 : i32
    %47 = arith.extui %46 : i1 to i32
    %c0_i32_45 = arith.constant 0 : i32
    %48 = arith.cmpi ne, %47, %c0_i32_45 : i32
    scf.if %48 {
      %c0_46 = arith.constant 0 : index
      %c0_47 = arith.constant 0 : index
      %49 = vector.load %arg10[%c0_46, %c0_47] : memref<8x128xf32, #tpu.memory_space<vmem>>, vector<8x128xf32>
      %50 = vector.shape_cast %49 : vector<8x128xf32> to vector<1x8x128xf32>
      %cst_48 = arith.constant dense<0.000000e+00> : vector<1xf32>
      %51 = vector.multi_reduction <add>, %50, %cst_48 [1, 2] : vector<1x8x128xf32> to vector<1xf32>
      %52 = vector.shape_cast %51 : vector<1xf32> to vector<1x1x1xf32>
      %53 = vector.extract %52[0, 0, 0] : f32 from vector<1x1x1xf32>
      %c0_49 = arith.constant 0 : index
      %c0_50 = arith.constant 0 : index
      %54 = vector.load %arg11[%c0_49, %c0_50] : memref<8x128xf32, #tpu.memory_space<vmem>>, vector<8x128xf32>
      %55 = vector.shape_cast %54 : vector<8x128xf32> to vector<1x8x128xf32>
      %cst_51 = arith.constant dense<0.000000e+00> : vector<1xf32>
      %56 = vector.multi_reduction <add>, %55, %cst_51 [1, 2] : vector<1x8x128xf32> to vector<1xf32>
      %57 = vector.shape_cast %56 : vector<1xf32> to vector<1x1x1xf32>
      %58 = vector.extract %57[0, 0, 0] : f32 from vector<1x1x1xf32>
      %c0_52 = arith.constant 0 : index
      %c0_53 = arith.constant 0 : index
      %59 = vector.load %arg12[%c0_52, %c0_53] : memref<8x128xf32, #tpu.memory_space<vmem>>, vector<8x128xf32>
      %60 = vector.shape_cast %59 : vector<8x128xf32> to vector<1x8x128xf32>
      %cst_54 = arith.constant dense<0.000000e+00> : vector<1xf32>
      %61 = vector.multi_reduction <add>, %60, %cst_54 [1, 2] : vector<1x8x128xf32> to vector<1xf32>
      %62 = vector.shape_cast %61 : vector<1xf32> to vector<1x1x1xf32>
      %63 = vector.extract %62[0, 0, 0] : f32 from vector<1x1x1xf32>
      %64 = tpu.iota {dimensions = array<i32: 2>} : vector<1x1x8x128xi32>
      %c0_i32_55 = arith.constant 0 : i32
      %65 = vector.broadcast %c0_i32_55 : i32 to vector<1x1x8x128xi32>
      %66 = arith.cmpi eq, %64, %65 : vector<1x1x8x128xi32>
      %cst_56 = arith.constant 0.000000e+00 : f32
      %67 = vector.broadcast %53 : f32 to vector<1x1x8x128xf32>
      %68 = vector.broadcast %cst_56 : f32 to vector<1x1x8x128xf32>
      %69 = arith.select %66, %67, %68 : vector<1x1x8x128xi1>, vector<1x1x8x128xf32>
      %c1_i32 = arith.constant 1 : i32
      %70 = vector.broadcast %c1_i32 : i32 to vector<1x1x8x128xi32>
      %71 = arith.cmpi eq, %64, %70 : vector<1x1x8x128xi32>
      %cst_57 = arith.constant 0.000000e+00 : f32
      %72 = vector.broadcast %58 : f32 to vector<1x1x8x128xf32>
      %73 = vector.broadcast %cst_57 : f32 to vector<1x1x8x128xf32>
      %74 = arith.select %71, %72, %73 : vector<1x1x8x128xi1>, vector<1x1x8x128xf32>
      %75 = arith.addf %69, %74 : vector<1x1x8x128xf32>
      %c2_i32 = arith.constant 2 : i32
      %76 = vector.broadcast %c2_i32 : i32 to vector<1x1x8x128xi32>
      %77 = arith.cmpi eq, %64, %76 : vector<1x1x8x128xi32>
      %cst_58 = arith.constant 0.000000e+00 : f32
      %78 = vector.broadcast %63 : f32 to vector<1x1x8x128xf32>
      %79 = vector.broadcast %cst_58 : f32 to vector<1x1x8x128xf32>
      %80 = arith.select %77, %78, %79 : vector<1x1x8x128xi1>, vector<1x1x8x128xf32>
      %81 = arith.addf %75, %80 : vector<1x1x8x128xf32>
      %c0_59 = arith.constant 0 : index
      %c0_60 = arith.constant 0 : index
      %c0_61 = arith.constant 0 : index
      %c0_62 = arith.constant 0 : index
      %82 = vector.load %arg9[%c0_59, %c0_60, %c0_61, %c0_62] : memref<1x1x8x128xf32, #tpu.memory_space<vmem>>, vector<1x1x8x128xf32>
      tpu.vector_store %arg9[%c0_59, %c0_60, %c0_61, %c0_62], %81 {strides = array<i32>} : memref<1x1x8x128xf32, #tpu.memory_space<vmem>>, vector<1x1x8x128xf32>,
    } else {
    }
    return
  }
  func.func @transform_0(%arg0: i32, %arg1: i32, %arg2: i32) -> (i32, i32, i32, i32) {
    %c1_i32 = arith.constant 1 : i32
    %0 = arith.muli %arg0, %c1_i32 : i32
    %1 = arith.addi %0, %arg2 : i32
    %c0_i32 = arith.constant 0 : i32
    %c0_i32_0 = arith.constant 0 : i32
    %c0_i32_1 = arith.constant 0 : i32
    return %arg1, %c0_i32, %1, %c0_i32_0 : i32, i32, i32, i32
  }
  func.func @transform_1(%arg0: i32, %arg1: i32, %arg2: i32) -> (i32, i32, i32, i32) {
    %c1_i32 = arith.constant 1 : i32
    %0 = arith.muli %arg0, %c1_i32 : i32
    %1 = arith.addi %0, %arg2 : i32
    %c0_i32 = arith.constant 0 : i32
    %c0_i32_0 = arith.constant 0 : i32
    %c0_i32_1 = arith.constant 0 : i32
    return %arg1, %c0_i32, %1, %c0_i32_0 : i32, i32, i32, i32
  }
  func.func @transform_2(%arg0: i32, %arg1: i32, %arg2: i32) -> (i32, i32, i32, i32) {
    %c1_i32 = arith.constant 1 : i32
    %0 = arith.muli %arg0, %c1_i32 : i32
    %1 = arith.addi %0, %arg2 : i32
    %c0_i32 = arith.constant 0 : i32
    %c0_i32_0 = arith.constant 0 : i32
    %c0_i32_1 = arith.constant 0 : i32
    return %arg1, %c0_i32, %1, %c0_i32_0 : i32, i32, i32, i32
  }
  func.func @transform_3(%arg0: i32, %arg1: i32, %arg2: i32) -> (i32, i32, i32, i32) {
    %c1_i32 = arith.constant 1 : i32
    %0 = arith.muli %arg0, %c1_i32 : i32
    %1 = arith.addi %0, %arg2 : i32
    %c0_i32 = arith.constant 0 : i32
    %c0_i32_0 = arith.constant 0 : i32
    %c0_i32_1 = arith.constant 0 : i32
    return %arg1, %c0_i32, %1, %c0_i32_0 : i32, i32, i32, i32
  }
  func.func @transform_4(%arg0: i32, %arg1: i32, %arg2: i32) -> (i32, i32, i32, i32) {
    %c1_i32 = arith.constant 1 : i32
    %0 = arith.muli %arg0, %c1_i32 : i32
    %1 = arith.addi %0, %arg2 : i32
    %c0_i32 = arith.constant 0 : i32
    %c0_i32_0 = arith.constant 0 : i32
    %c0_i32_1 = arith.constant 0 : i32
    return %arg1, %c0_i32, %1, %c0_i32_0 : i32, i32, i32, i32
  }
  func.func @transform_5(%arg0: i32, %arg1: i32, %arg2: i32) -> (i32, i32, i32, i32) {
    %c1_i32 = arith.constant 1 : i32
    %0 = arith.muli %arg0, %c1_i32 : i32
    %1 = arith.addi %0, %arg2 : i32
    %c0_i32 = arith.constant 0 : i32
    %c0_i32_0 = arith.constant 0 : i32
    %c0_i32_1 = arith.constant 0 : i32
    return %arg1, %c0_i32, %1, %c0_i32_0 : i32, i32, i32, i32
  }
  func.func @transform_6(%arg0: i32, %arg1: i32, %arg2: i32) -> (i32, i32, i32, i32) {
    %c0_i32 = arith.constant 0 : i32
    %c0_i32_0 = arith.constant 0 : i32
    %c0_i32_1 = arith.constant 0 : i32
    return %arg0, %arg1, %c0_i32, %c0_i32_0 : i32, i32, i32, i32
  }
}

</mosaic_0001>

<llo_original>
// kernel: tpu_custom_call.1
$region0: #{tpu_custom_call.1}
  #allocation0 [shape = 'u32[]', space=smem, size = 0x4, offset = 0x4, fixed_abs, tag = 'smem constant byte address 0x4 - core index']
  #allocation1 [shape = 'u32[144,128]{1,0:T(1,128)}', space=vmem, size = 0x12000, scoped, tag = 'internal scratch']
  #allocation2 [shape = 'f32[8,128]{1,0:T(8,128)}', space=vmem, size = 0x1000, scoped, tag = 'scratch operand']
  #allocation3 [shape = 'f32[8,128]{1,0:T(8,128)}', space=vmem, size = 0x1000, scoped, tag = 'scratch operand']
  #allocation4 [shape = 'f32[8,128]{1,0:T(8,128)}', space=vmem, size = 0x1000, scoped, tag = 'scratch operand']
  %s0 = inlined_call_operand.hbm [shape: f32[2,4,16,128], index: 0, kind: input, shape index: {}]
  %s1 = inlined_call_operand.hbm [shape: f32[2,4,16,128], index: 1, kind: input, shape index: {}]
  %s2 = inlined_call_operand.hbm [shape: f32[2,1,16,128], index: 2, kind: input, shape index: {}]
  %s3 = inlined_call_operand.hbm [shape: f32[2,8,16,128], index: 3, kind: input, shape index: {}]
  %s4 = inlined_call_operand.hbm [shape: f32[2,8,16,128], index: 4, kind: input, shape index: {}]
  %s5 = inlined_call_operand.hbm [shape: f32[2,8,16,128], index: 5, kind: input, shape index: {}]
  %s6 = inlined_call_operand.hbm [shape: f32[2,2,8,128], index: 6, kind: output, shape index: {}]
  %s7 = sld [smem:[#allocation0]]
  $region89: #{tpu_custom_call.1} parent=0
    _
  %s9 = ssub.s32 1, %s7
  %s10 = scalar_select 0, %s9, %s7
  $region1: #{tpu_custom_call.1} parent=0
    #allocation5 [shape = 'u8[32768]{0}', space=vmem, size = 0x8000, scoped, tag = 'input window, operand 0']
    #allocation6 [shape = 's32[2]{0}', space=sflag, size = 0x8, scoped, tag = 'scoped memory for tpu_custom_call.1']
    #allocation7 [shape = 's32[2]{0}', space=sflag, size = 0x8, scoped, tag = 'scoped memory for tpu_custom_call.1']
    #allocation8 [shape = 'u8[32768]{0}', space=vmem, size = 0x8000, scoped, tag = 'input window, operand 1']
    #allocation9 [shape = 's32[2]{0}', space=sflag, size = 0x8, scoped, tag = 'scoped memory for tpu_custom_call.1']
    #allocation10 [shape = 'u8[8192]{0}', space=vmem, size = 0x2000, scoped, tag = 'input window, operand 2']
    #allocation11 [shape = 'u8[65536]{0}', space=vmem, size = 0x10000, scoped, tag = 'input window, operand 3']
    #allocation12 [shape = 's32[2]{0}', space=sflag, size = 0x8, scoped, tag = 'scoped memory for tpu_custom_call.1']
    #allocation13 [shape = 'u8[65536]{0}', space=vmem, size = 0x10000, scoped, tag = 'input window, operand 4']
    #allocation14 [shape = 'u8[65536]{0}', space=vmem, size = 0x10000, scoped, tag = 'input window, operand 5']
    #allocation15 [shape = 's32[2]{0}', space=sflag, size = 0x8, scoped, tag = 'scoped memory for tpu_custom_call.1']
    #allocation16 [shape = 'u8[8192]{0}', space=vmem, size = 0x2000, scoped, tag = 'output window, operand 0']
    %11 = vsyncpa [#allocation6], 0
    %s12 = scalar_lea.sflag [#allocation6], 1
    %13 = vsyncpa %s12, 0
    %14 = vsyncpa [#allocation9], 0
    %s15 = scalar_lea.sflag [#allocation9], 1
    %16 = vsyncpa %s15, 0
    %17 = vsyncpa [#allocation12], 0
    %s18 = scalar_lea.sflag [#allocation12], 1
    %19 = vsyncpa %s18, 0
    %20 = vsyncpa [#allocation15], 0
    %s21 = scalar_lea.sflag [#allocation15], 1
    %22 = vsyncpa %s21, 0
    %23 = vsyncpa [#allocation7], 0
    %s24 = scalar_lea.sflag [#allocation7], 1
    %25 = vsyncpa %s24, 0
    loop: start=0, step=1, limit=6
    $region2: #{tpu_custom_call.1} parent=1 // loop_pre_header
      _
    $region3: #{tpu_custom_call.1} parent=1 // loop_header
      %s27 = sphi 0, %s31
      %p28 = scmp.ge.s32.totalorder %s27, 6
      %s34 = sphi 0, %s53
      %s35 = sphi 0, %s49
      %s36 = sphi 0, %s45
      %s37 = sphi 0, %s34
      %s38 = sphi 0, %s35
      %s39 = sphi 0, %s36
      %s40 = sphi 0, %s37
      %s41 = sphi 0, %s38
      %s42 = sphi 0, %s39
      %s60 = sphi 0, %s62
      %s63 = sphi 0, %s60
      %s64 = sphi 0, %s63
      %s80 = sphi 0, %s64
      %s90 = sphi 0, %s92
      %s93 = sphi 0, %s90
      %s94 = sphi 0, %s93
      %s110 = sphi 0, %s94
      %s120 = sphi 0, %s122
      %s123 = sphi 0, %s120
      %s124 = sphi 0, %s123
      %s140 = sphi 0, %s124
      %s150 = sphi 0, %s152
      %s153 = sphi 0, %s150
      %s154 = sphi 0, %s153
      %s170 = sphi 0, %s154
      %s180 = sphi 0, %s182
      %s183 = sphi 0, %s180
      %s184 = sphi 0, %s183
      %s200 = sphi 0, %s184
      %s210 = sphi 0, %s212
      %s213 = sphi 0, %s210
      %s214 = sphi 0, %s213
      %s230 = sphi 0, %s214
      %s238 = sphi 0, %s240
      %s241 = sphi 0, %s238
      %s242 = sphi 0, %s241
      %s258 = sphi 0, %s242
    $region4: #{tpu_custom_call.1} parent=1 // loop_header_branch
      %30 = sbr.rel (%p28) target = $region8
    $region5: #{tpu_custom_call.1} parent=1 // loop_body
      %s32 = ssub.s32 %s27, 1
      %s33 = ssub.s32 %s27, 2
      %s43 = sadd.s32 1, %s36
      %p44 = scmp.ge.s32.totalorder %s43, 1
      %s45 = scalar_select %p44, 0, %s43
      %s46 = sadd.s32 1, %s35
      %s47 = scalar_select %p44, %s46, %s35
      %p48 = scmp.ge.s32.totalorder %s47, 2
      %s49 = scalar_select %p48, 0, %s47
      %s50 = sadd.s32 1, %s34
      %s51 = scalar_select %p48, %s50, %s34
      %p52 = scmp.ge.s32.totalorder %s51, 2
      %s53 = scalar_select %p52, 0, %s51
      %s54 = sadd.s32 %s34, %s36
      %s55 = sadd.s32 %s53, %s45
      %s56 = ssub.s32 %s35, %s49
      %s57 = ssub.s32 %s54, %s55
      %s58 = sor.u32 %s56, %s57
      %p59 = scmp.eq.s32.totalorder %s58, 0
      %s61 = sadd.s32 %s60, 1
      %s62 = scalar_select %p59, %s60, %s61
      %p65 = pneg %p59
      %p66 = scmp.eq.s32.totalorder %s27, 3
      %p67 = por %p65, %p66
      %p68 = scmp.ne.s32.totalorder %s60, %s63
      %p69 = scmp.eq.s32.totalorder %s27, 0
      %p70 = por %p68, %p69
      %p71 = scmp.ne.s32.totalorder %s60, %s63
      %p72 = scmp.eq.s32.totalorder %s32, 3
      %p73 = por %p71, %p72
      %p74 = scmp.ne.s32.totalorder %s63, %s64
      %p75 = scmp.eq.s32.totalorder %s32, 0
      %p76 = por %p74, %p75
      %p77 = scmp.ne.s32.totalorder %s63, %s64
      %p78 = scmp.eq.s32.totalorder %s33, 3
      %p79 = por %p77, %p78
      %p81 = scmp.ne.s32.totalorder %s64, %s80
      %p82 = scmp.eq.s32.totalorder %s33, 0
      %p83 = por %p81, %p82
      %s84 = sadd.s32 %s34, %s36
      %s85 = sadd.s32 %s53, %s45
      %s86 = ssub.s32 %s35, %s49
      %s87 = ssub.s32 %s84, %s85
      %s88 = sor.u32 %s86, %s87
      %p89 = scmp.eq.s32.totalorder %s88, 0
      %s91 = sadd.s32 %s90, 1
      %s92 = scalar_select %p89, %s90, %s91
      %p95 = pneg %p89
      %p96 = scmp.eq.s32.totalorder %s27, 3
      %p97 = por %p95, %p96
      %p98 = scmp.ne.s32.totalorder %s90, %s93
      %p99 = scmp.eq.s32.totalorder %s27, 0
      %p100 = por %p98, %p99
      %p101 = scmp.ne.s32.totalorder %s90, %s93
      %p102 = scmp.eq.s32.totalorder %s32, 3
      %p103 = por %p101, %p102
      %p104 = scmp.ne.s32.totalorder %s93, %s94
      %p105 = scmp.eq.s32.totalorder %s32, 0
      %p106 = por %p104, %p105
      %p107 = scmp.ne.s32.totalorder %s93, %s94
      %p108 = scmp.eq.s32.totalorder %s33, 3
      %p109 = por %p107, %p108
      %p111 = scmp.ne.s32.totalorder %s94, %s110
      %p112 = scmp.eq.s32.totalorder %s33, 0
      %p113 = por %p111, %p112
      %s114 = sadd.s32 %s34, %s36
      %s115 = sadd.s32 %s53, %s45
      %s116 = ssub.s32 %s35, %s49
      %s117 = ssub.s32 %s114, %s115
      %s118 = sor.u32 %s116, %s117
      %p119 = scmp.eq.s32.totalorder %s118, 0
      %s121 = sadd.s32 %s120, 1
      %s122 = scalar_select %p119, %s120, %s121
      %p125 = pneg %p119
      %p126 = scmp.eq.s32.totalorder %s27, 3
      %p127 = por %p125, %p126
      %p128 = scmp.ne.s32.totalorder %s120, %s123
      %p129 = scmp.eq.s32.totalorder %s27, 0
      %p130 = por %p128, %p129
      %p131 = scmp.ne.s32.totalorder %s120, %s123
      %p132 = scmp.eq.s32.totalorder %s32, 3
      %p133 = por %p131, %p132
      %p134 = scmp.ne.s32.totalorder %s123, %s124
      %p135 = scmp.eq.s32.totalorder %s32, 0
      %p136 = por %p134, %p135
      %p137 = scmp.ne.s32.totalorder %s123, %s124
      %p138 = scmp.eq.s32.totalorder %s33, 3
      %p139 = por %p137, %p138
      %p141 = scmp.ne.s32.totalorder %s124, %s140
      %p142 = scmp.eq.s32.totalorder %s33, 0
      %p143 = por %p141, %p142
      %s144 = sadd.s32 %s34, %s36
      %s145 = sadd.s32 %s53, %s45
      %s146 = ssub.s32 %s35, %s49
      %s147 = ssub.s32 %s144, %s145
      %s148 = sor.u32 %s146, %s147
      %p149 = scmp.eq.s32.totalorder %s148, 0
      %s151 = sadd.s32 %s150, 1
      %s152 = scalar_select %p149, %s150, %s151
      %p155 = pneg %p149
      %p156 = scmp.eq.s32.totalorder %s27, 3
      %p157 = por %p155, %p156
      %p158 = scmp.ne.s32.totalorder %s150, %s153
      %p159 = scmp.eq.s32.totalorder %s27, 0
      %p160 = por %p158, %p159
      %p161 = scmp.ne.s32.totalorder %s150, %s153
      %p162 = scmp.eq.s32.totalorder %s32, 3
      %p163 = por %p161, %p162
      %p164 = scmp.ne.s32.totalorder %s153, %s154
      %p165 = scmp.eq.s32.totalorder %s32, 0
      %p166 = por %p164, %p165
      %p167 = scmp.ne.s32.totalorder %s153, %s154
      %p168 = scmp.eq.s32.totalorder %s33, 3
      %p169 = por %p167, %p168
      %p171 = scmp.ne.s32.totalorder %s154, %s170
      %p172 = scmp.eq.s32.totalorder %s33, 0
      %p173 = por %p171, %p172
      %s174 = sadd.s32 %s34, %s36
      %s175 = sadd.s32 %s53, %s45
      %s176 = ssub.s32 %s35, %s49
      %s177 = ssub.s32 %s174, %s175
      %s178 = sor.u32 %s176, %s177
      %p179 = scmp.eq.s32.totalorder %s178, 0
      %s181 = sadd.s32 %s180, 1
      %s182 = scalar_select %p179, %s180, %s181
      %p185 = pneg %p179
      %p186 = scmp.eq.s32.totalorder %s27, 3
      %p187 = por %p185, %p186
      %p188 = scmp.ne.s32.totalorder %s180, %s183
      %p189 = scmp.eq.s32.totalorder %s27, 0
      %p190 = por %p188, %p189
      %p191 = scmp.ne.s32.totalorder %s180, %s183
      %p192 = scmp.eq.s32.totalorder %s32, 3
      %p193 = por %p191, %p192
      %p194 = scmp.ne.s32.totalorder %s183, %s184
      %p195 = scmp.eq.s32.totalorder %s32, 0
      %p196 = por %p194, %p195
      %p197 = scmp.ne.s32.totalorder %s183, %s184
      %p198 = scmp.eq.s32.totalorder %s33, 3
      %p199 = por %p197, %p198
      %p201 = scmp.ne.s32.totalorder %s184, %s200
      %p202 = scmp.eq.s32.totalorder %s33, 0
      %p203 = por %p201, %p202
      %s204 = sadd.s32 %s34, %s36
      %s205 = sadd.s32 %s53, %s45
      %s206 = ssub.s32 %s35, %s49
      %s207 = ssub.s32 %s204, %s205
      %s208 = sor.u32 %s206, %s207
      %p209 = scmp.eq.s32.totalorder %s208, 0
      %s211 = sadd.s32 %s210, 1
      %s212 = scalar_select %p209, %s210, %s211
      %p215 = pneg %p209
      %p216 = scmp.eq.s32.totalorder %s27, 3
      %p217 = por %p215, %p216
      %p218 = scmp.ne.s32.totalorder %s210, %s213
      %p219 = scmp.eq.s32.totalorder %s27, 0
      %p220 = por %p218, %p219
      %p221 = scmp.ne.s32.totalorder %s210, %s213
      %p222 = scmp.eq.s32.totalorder %s32, 3
      %p223 = por %p221, %p222
      %p224 = scmp.ne.s32.totalorder %s213, %s214
      %p225 = scmp.eq.s32.totalorder %s32, 0
      %p226 = por %p224, %p225
      %p227 = scmp.ne.s32.totalorder %s213, %s214
      %p228 = scmp.eq.s32.totalorder %s33, 3
      %p229 = por %p227, %p228
      %p231 = scmp.ne.s32.totalorder %s214, %s230
      %p232 = scmp.eq.s32.totalorder %s33, 0
      %p233 = por %p231, %p232
      %s234 = ssub.s32 %s34, %s53
      %s235 = ssub.s32 %s35, %s49
      %s236 = sor.u32 %s234, %s235
      %p237 = scmp.eq.s32.totalorder %s236, 0
      %s239 = sadd.s32 %s238, 1
      %s240 = scalar_select %p237, %s238, %s239
      %p243 = pneg %p237
      %p244 = scmp.eq.s32.totalorder %s27, 3
      %p245 = por %p243, %p244
      %p246 = scmp.ne.s32.totalorder %s238, %s241
      %p247 = scmp.eq.s32.totalorder %s27, 0
      %p248 = por %p246, %p247
      %p249 = scmp.ne.s32.totalorder %s238, %s241
      %p250 = scmp.eq.s32.totalorder %s32, 3
      %p251 = por %p249, %p250
      %p252 = scmp.ne.s32.totalorder %s241, %s242
      %p253 = scmp.eq.s32.totalorder %s32, 0
      %p254 = por %p252, %p253
      %p255 = scmp.ne.s32.totalorder %s241, %s242
      %p256 = scmp.eq.s32.totalorder %s33, 3
      %p257 = por %p255, %p256
      %p259 = scmp.ne.s32.totalorder %s242, %s258
      %p260 = scmp.eq.s32.totalorder %s33, 0
      %p261 = por %p259, %p260
      %p262 = scmp.le.s32.totalorder 1, %s27
      %p263 = scmp.lt.s32.totalorder %s27, 5
      %p264 = pnand %p262, %p263
      %p265 = pneg %p264
      // Predicated region
      $region9: #{tpu_custom_call.1} parent=5 // pred_check
        _
      $region10: #{tpu_custom_call.1} parent=5 // pred_check_branch
        %267 = sbr.rel (%p264) target = $region12
      $region11: #{tpu_custom_call.1} parent=5 // pred_region
        %s268 = ssub.s32 %s27, 1
      $region12: #{tpu_custom_call.1} parent=5 // pred_fallthru
        _
      %p269 = scmp.lt.s32.totalorder %s27, 4
      // Predicated region
      $region13: #{tpu_custom_call.1} parent=5 // pred_check
        %p270 = pneg %p269
      $region14: #{tpu_custom_call.1} parent=5 // pred_check_branch
        %272 = sbr.rel (%p270) target = $region16
      $region15: #{tpu_custom_call.1} parent=5 // pred_region
        // Predicated region
        $region17: #{tpu_custom_call.1} parent=15 // pred_check
          %p273 = pneg %p70
        $region18: #{tpu_custom_call.1} parent=15 // pred_check_branch
          %275 = sbr.rel (%p273) target = $region20
        $region19: #{tpu_custom_call.1} parent=15 // pred_region
          %s276 = sand.u32 %s60, 1
          %s277 = scalar_lea.sflag [#allocation6], %s276
          %s278 = sand.u32 %s60, 1
          %s279 = smul.addr %s278, 32
          %s280 = scalar_lea.vmem [#allocation5], %s279
          %s281 = sadd.s32 %s34, %s36
          %s283 = ssub.s32 512, 512
          %284 = vsyncadd %s277, %s283
          %s285 = smul.addr %s35, 8
          %s286 = sadd.s32 %s281, %s285
          %s287 = smul.addr %s286, 128
          %s288 = scalar_lea.hbm %s0, %s287
          %s289 = sshll.u32 %s280, 4
          %s290 = int_to_ptr.vmem [resolvable:$true] %s289
          %295 = dma.hbm_to_vmem [thread:$0]  %s288, 512, %s290, %s277, 256, 128, 8
        $region20: #{tpu_custom_call.1} parent=15 // pred_fallthru
          _
        // Predicated region
        $region21: #{tpu_custom_call.1} parent=15 // pred_check
          %p296 = pneg %p100
        $region22: #{tpu_custom_call.1} parent=15 // pred_check_branch
          %298 = sbr.rel (%p296) target = $region24
        $region23: #{tpu_custom_call.1} parent=15 // pred_region
          %s299 = sand.u32 %s27, 1
          %s300 = scalar_lea.sflag [#allocation9], %s299
          %s301 = sand.u32 %s90, 1
          %s302 = smul.addr %s301, 32
          %s303 = scalar_lea.vmem [#allocation8], %s302
          %s304 = sadd.s32 %s34, %s36
          %s306 = ssub.s32 512, 512
          %307 = vsyncadd %s300, %s306
          %s308 = smul.addr %s35, 8
          %s309 = sadd.s32 %s304, %s308
          %s310 = smul.addr %s309, 128
          %s311 = scalar_lea.hbm %s1, %s310
          %s312 = sshll.u32 %s303, 4
          %s313 = int_to_ptr.vmem [resolvable:$true] %s312
          %318 = dma.hbm_to_vmem [thread:$0]  %s311, 512, %s313, %s300, 256, 128, 8
        $region24: #{tpu_custom_call.1} parent=15 // pred_fallthru
          _
        // Predicated region
        $region25: #{tpu_custom_call.1} parent=15 // pred_check
          %p319 = pneg %p130
        $region26: #{tpu_custom_call.1} parent=15 // pred_check_branch
          %321 = sbr.rel (%p319) target = $region28
        $region27: #{tpu_custom_call.1} parent=15 // pred_region
          %s322 = sand.u32 %s27, 1
          %s323 = scalar_lea.sflag [#allocation9], %s322
          %s324 = sand.u32 %s120, 1
          %s325 = smul.addr %s324, 8
          %s326 = scalar_lea.vmem [#allocation10], %s325
          %s327 = sadd.s32 %s34, %s36
          %s329 = ssub.s32 128, 128
          %330 = vsyncadd %s323, %s329
          %s331 = smul.addr %s35, 2
          %s332 = sadd.s32 %s327, %s331
          %s333 = smul.addr %s332, 128
          %s334 = scalar_lea.hbm %s2, %s333
          %s336 = sshll.u32 %s326, 4
          %s337 = int_to_ptr.vmem [resolvable:$true] %s336
          %339 = dma.hbm_to_vmem [thread:$0]  %s334, 128, %s337, %s323
        $region28: #{tpu_custom_call.1} parent=15 // pred_fallthru
          _
        // Predicated region
        $region29: #{tpu_custom_call.1} parent=15 // pred_check
          %p340 = pneg %p160
        $region30: #{tpu_custom_call.1} parent=15 // pred_check_branch
          %342 = sbr.rel (%p340) target = $region32
        $region31: #{tpu_custom_call.1} parent=15 // pred_region
          %s343 = sand.u32 %s27, 1
          %s344 = scalar_lea.sflag [#allocation12], %s343
          %s345 = sand.u32 %s150, 1
          %s346 = smul.addr %s345, 64
          %s347 = scalar_lea.vmem [#allocation11], %s346
          %s348 = sadd.s32 %s34, %s36
          %s350 = ssub.s32 1024, 1024
          %351 = vsyncadd %s344, %s350
          %s352 = smul.addr %s35, 16
          %s353 = sadd.s32 %s348, %s352
          %s354 = smul.addr %s353, 128
          %s355 = scalar_lea.hbm %s3, %s354
          %s356 = sshll.u32 %s347, 4
          %s357 = int_to_ptr.vmem [resolvable:$true] %s356
          %362 = dma.hbm_to_vmem [thread:$0]  %s355, 1024, %s357, %s344, 256, 128, 8
        $region32: #{tpu_custom_call.1} parent=15 // pred_fallthru
          _
        // Predicated region
        $region33: #{tpu_custom_call.1} parent=15 // pred_check
          %p363 = pneg %p190
        $region34: #{tpu_custom_call.1} parent=15 // pred_check_branch
          %365 = sbr.rel (%p363) target = $region36
        $region35: #{tpu_custom_call.1} parent=15 // pred_region
          %s366 = sand.u32 %s27, 1
          %s367 = scalar_lea.sflag [#allocation12], %s366
          %s368 = sand.u32 %s180, 1
          %s369 = smul.addr %s368, 64
          %s370 = scalar_lea.vmem [#allocation13], %s369
          %s371 = sadd.s32 %s34, %s36
          %s373 = ssub.s32 1024, 1024
          %374 = vsyncadd %s367, %s373
          %s375 = smul.addr %s35, 16
          %s376 = sadd.s32 %s371, %s375
          %s377 = smul.addr %s376, 128
          %s378 = scalar_lea.hbm %s4, %s377
          %s379 = sshll.u32 %s370, 4
          %s380 = int_to_ptr.vmem [resolvable:$true] %s379
          %385 = dma.hbm_to_vmem [thread:$0]  %s378, 1024, %s380, %s367, 256, 128, 8
        $region36: #{tpu_custom_call.1} parent=15 // pred_fallthru
          _
        // Predicated region
        $region37: #{tpu_custom_call.1} parent=15 // pred_check
          %p386 = pneg %p220
        $region38: #{tpu_custom_call.1} parent=15 // pred_check_branch
          %388 = sbr.rel (%p386) target = $region40
        $region39: #{tpu_custom_call.1} parent=15 // pred_region
          %s389 = sand.u32 %s210, 1
          %s390 = scalar_lea.sflag [#allocation15], %s389
          %s391 = sand.u32 %s210, 1
          %s392 = smul.addr %s391, 64
          %s393 = scalar_lea.vmem [#allocation14], %s392
          %s394 = sadd.s32 %s34, %s36
          %s396 = ssub.s32 1024, 1024
          %397 = vsyncadd %s390, %s396
          %s398 = smul.addr %s35, 16
          %s399 = sadd.s32 %s394, %s398
          %s400 = smul.addr %s399, 128
          %s401 = scalar_lea.hbm %s5, %s400
          %s402 = sshll.u32 %s393, 4
          %s403 = int_to_ptr.vmem [resolvable:$true] %s402
          %408 = dma.hbm_to_vmem [thread:$0]  %s401, 1024, %s403, %s390, 256, 128, 8
        $region40: #{tpu_custom_call.1} parent=15 // pred_fallthru
          _
      $region16: #{tpu_custom_call.1} parent=5 // pred_fallthru
        _
      %p409 = scmp.le.s32.totalorder 1, %s27
      %p410 = scmp.lt.s32.totalorder %s27, 5
      %p411 = pnand %p409, %p410
      %p412 = pneg %p411
      // Predicated region
      $region41: #{tpu_custom_call.1} parent=5 // pred_check
        _
      $region42: #{tpu_custom_call.1} parent=5 // pred_check_branch
        %414 = sbr.rel (%p411) target = $region44
      $region43: #{tpu_custom_call.1} parent=5 // pred_region
        %s415 = ssub.s32 %s27, 1
        %s416 = sand.u32 %s63, 1
        %s417 = scalar_lea.sflag [#allocation6], %s416
        %s418 = sand.u32 %s63, 1
        %s419 = smul.addr %s418, 32
        %s420 = scalar_lea.vmem [#allocation5], %s419
        // Predicated region
        $region45: #{tpu_custom_call.1} parent=43 // pred_check
          %p421 = pneg %p76
        $region46: #{tpu_custom_call.1} parent=43 // pred_check_branch
          %423 = sbr.rel (%p421) target = $region48
        $region47: #{tpu_custom_call.1} parent=43 // pred_region
          %424 = dma.done %s417, 512
        $region48: #{tpu_custom_call.1} parent=43 // pred_fallthru
          _
        %s425 = sand.u32 %s32, 1
        %s426 = scalar_lea.sflag [#allocation9], %s425
        %s427 = sand.u32 %s93, 1
        %s428 = smul.addr %s427, 32
        %s429 = scalar_lea.vmem [#allocation8], %s428
        // Predicated region
        $region49: #{tpu_custom_call.1} parent=43 // pred_check
          %p430 = pneg %p106
        $region50: #{tpu_custom_call.1} parent=43 // pred_check_branch
          %432 = sbr.rel (%p430) target = $region52
        $region51: #{tpu_custom_call.1} parent=43 // pred_region
          %433 = dma.done %s426, 512
        $region52: #{tpu_custom_call.1} parent=43 // pred_fallthru
          _
        %s434 = sand.u32 %s32, 1
        %s435 = scalar_lea.sflag [#allocation9], %s434
        %s436 = sand.u32 %s123, 1
        %s437 = smul.addr %s436, 8
        %s438 = scalar_lea.vmem [#allocation10], %s437
        // Predicated region
        $region53: #{tpu_custom_call.1} parent=43 // pred_check
          %p439 = pneg %p136
        $region54: #{tpu_custom_call.1} parent=43 // pred_check_branch
          %441 = sbr.rel (%p439) target = $region56
        $region55: #{tpu_custom_call.1} parent=43 // pred_region
          %442 = dma.done %s435, 128
        $region56: #{tpu_custom_call.1} parent=43 // pred_fallthru
          _
        %s443 = sand.u32 %s32, 1
        %s444 = scalar_lea.sflag [#allocation12], %s443
        %s445 = sand.u32 %s153, 1
        %s446 = smul.addr %s445, 64
        %s447 = scalar_lea.vmem [#allocation11], %s446
        // Predicated region
        $region57: #{tpu_custom_call.1} parent=43 // pred_check
          %p448 = pneg %p166
        $region58: #{tpu_custom_call.1} parent=43 // pred_check_branch
          %450 = sbr.rel (%p448) target = $region60
        $region59: #{tpu_custom_call.1} parent=43 // pred_region
          %451 = dma.done %s444, 1024
        $region60: #{tpu_custom_call.1} parent=43 // pred_fallthru
          _
        %s452 = sand.u32 %s32, 1
        %s453 = scalar_lea.sflag [#allocation12], %s452
        %s454 = sand.u32 %s183, 1
        %s455 = smul.addr %s454, 64
        %s456 = scalar_lea.vmem [#allocation13], %s455
        // Predicated region
        $region61: #{tpu_custom_call.1} parent=43 // pred_check
          %p457 = pneg %p196
        $region62: #{tpu_custom_call.1} parent=43 // pred_check_branch
          %459 = sbr.rel (%p457) target = $region64
        $region63: #{tpu_custom_call.1} parent=43 // pred_region
          %460 = dma.done %s453, 1024
        $region64: #{tpu_custom_call.1} parent=43 // pred_fallthru
          _
        %s461 = sand.u32 %s213, 1
        %s462 = scalar_lea.sflag [#allocation15], %s461
        %s463 = sand.u32 %s213, 1
        %s464 = smul.addr %s463, 64
        %s465 = scalar_lea.vmem [#allocation14], %s464
        // Predicated region
        $region65: #{tpu_custom_call.1} parent=43 // pred_check
          %p466 = pneg %p226
        $region66: #{tpu_custom_call.1} parent=43 // pred_check_branch
          %468 = sbr.rel (%p466) target = $region68
        $region67: #{tpu_custom_call.1} parent=43 // pred_region
          %469 = dma.done %s462, 1024
        $region68: #{tpu_custom_call.1} parent=43 // pred_fallthru
          _
        %s470 = sand.u32 %s63, 1
        %s471 = scalar_lea.sflag [#allocation6], %s470
        %s472 = sand.u32 %s63, 1
        %s473 = smul.addr %s472, 32
        %s474 = scalar_lea.vmem [#allocation5], %s473
        %p475 = pneg %p76
        %p476 = pneg %p73
        %s477 = sand.u32 %s32, 1
        %s478 = scalar_lea.sflag [#allocation9], %s477
        %s479 = sand.u32 %s93, 1
        %s480 = smul.addr %s479, 32
        %s481 = scalar_lea.vmem [#allocation8], %s480
        %p482 = pneg %p106
        %p483 = pneg %p103
        %s484 = sand.u32 %s32, 1
        %s485 = scalar_lea.sflag [#allocation9], %s484
        %s486 = sand.u32 %s123, 1
        %s487 = smul.addr %s486, 8
        %s488 = scalar_lea.vmem [#allocation10], %s487
        %p489 = pneg %p136
        %p490 = pneg %p133
        %s491 = sand.u32 %s32, 1
        %s492 = scalar_lea.sflag [#allocation12], %s491
        %s493 = sand.u32 %s153, 1
        %s494 = smul.addr %s493, 64
        %s495 = scalar_lea.vmem [#allocation11], %s494
        %p496 = pneg %p166
        %p497 = pneg %p163
        %s498 = sand.u32 %s32, 1
        %s499 = scalar_lea.sflag [#allocation12], %s498
        %s500 = sand.u32 %s183, 1
        %s501 = smul.addr %s500, 64
        %s502 = scalar_lea.vmem [#allocation13], %s501
        %p503 = pneg %p196
        %p504 = pneg %p193
        %s505 = sand.u32 %s213, 1
        %s506 = scalar_lea.sflag [#allocation15], %s505
        %s507 = sand.u32 %s213, 1
        %s508 = smul.addr %s507, 64
        %s509 = scalar_lea.vmem [#allocation14], %s508
        %p510 = pneg %p226
        %p511 = pneg %p223
        %p512 = pneg %p254
        %p513 = pneg %p251
        %s514 = sand.u32 %s241, 1
        %s515 = scalar_lea.sflag [#allocation7], %s514
        %s516 = sand.u32 %s241, 1
        %s517 = smul.addr %s516, 8
        %s518 = scalar_lea.vmem [#allocation16], %s517
        %s519 = sadd.s32 %s37, %s39
        %s520 = sadd.s32 %s37, %s39
        %s521 = sadd.s32 %s37, %s39
        %s522 = sadd.s32 %s37, %s39
        %s523 = sadd.s32 %s37, %s39
        %s524 = sadd.s32 %s37, %s39
        %p525 = scmp.eq.s32.totalorder %s39, 0
        // Predicated region
        $region69: #{tpu_custom_call.1} parent=43 // pred_check
          %p526 = pneg %p525
        $region70: #{tpu_custom_call.1} parent=43 // pred_check_branch
          %528 = sbr.rel (%p526) target = $region72
        $region71: #{tpu_custom_call.1} parent=43 // pred_region
          %529 = vst [vmem:[#allocation2] sm:$0xff] 0.0
          %530 = vst [vmem:[#allocation3] sm:$0xff] 0.0
          %531 = vst [vmem:[#allocation4] sm:$0xff] 0.0
        $region72: #{tpu_custom_call.1} parent=43 // pred_fallthru
          _
        %v532 = vld [vmem:[%s420] sm:$0xff]
        %v533 = vld [vmem:[%s420 + $0x8] sm:$0xff]
        %v534 = vld [vmem:[%s420 + $0x10] sm:$0xff]
        %v535 = vld [vmem:[%s420 + $0x18] sm:$0xff]
        %v536 = vld [vmem:[%s429] sm:$0xff]
        %v537 = vld [vmem:[%s429 + $0x8] sm:$0xff]
        %v538 = vld [vmem:[%s429 + $0x10] sm:$0xff]
        %v539 = vld [vmem:[%s429 + $0x18] sm:$0xff]
        %v540 = vld [vmem:[%s438] sm:$0xff]
        %v541 = vsub.f32 %v532, %v536
        %v542 = vsub.f32 %v533, %v537
        %v543 = vsub.f32 %v534, %v538
        %v544 = vsub.f32 %v535, %v539
        %v545 = vld [vmem:[#allocation2] sm:$0xff]
        %v546 = vmul.f32 %v541, %v541
        %v547 = vmul.f32 %v542, %v542
        %v548 = vmul.f32 %v543, %v543
        %v549 = vmul.f32 %v544, %v544
        %v550 = vadd.f32 %v546, %v547
        %v551 = vadd.f32 %v550, %v548
        %v552 = vadd.f32 %v551, %v549
        %v553 = vmul.f32 %v552, %v540
        %v554 = vadd.f32 %v545, %v553
        %555 = vst [vmem:[#allocation2] sm:$0xff] %v554
        %v556 = vld [vmem:[%s447] sm:$0xff]
        %v557 = vld [vmem:[%s447 + $0x8] sm:$0xff]
        %v558 = vld [vmem:[%s447 + $0x10] sm:$0xff]
        %v559 = vld [vmem:[%s447 + $0x18] sm:$0xff]
        %v560 = vld [vmem:[%s447 + $0x20] sm:$0xff]
        %v561 = vld [vmem:[%s447 + $0x28] sm:$0xff]
        %v562 = vld [vmem:[%s447 + $0x30] sm:$0xff]
        %v563 = vld [vmem:[%s447 + $0x38] sm:$0xff]
        %v564 = vld [vmem:[%s456] sm:$0xff]
        %v565 = vld [vmem:[%s456 + $0x8] sm:$0xff]
        %v566 = vld [vmem:[%s456 + $0x10] sm:$0xff]
        %v567 = vld [vmem:[%s456 + $0x18] sm:$0xff]
        %v568 = vld [vmem:[%s456 + $0x20] sm:$0xff]
        %v569 = vld [vmem:[%s456 + $0x28] sm:$0xff]
        %v570 = vld [vmem:[%s456 + $0x30] sm:$0xff]
        %v571 = vld [vmem:[%s456 + $0x38] sm:$0xff]
        %v572 = vld [vmem:[%s465] sm:$0xff]
        %v573 = vld [vmem:[%s465 + $0x8] sm:$0xff]
        %v574 = vld [vmem:[%s465 + $0x10] sm:$0xff]
        %v575 = vld [vmem:[%s465 + $0x18] sm:$0xff]
        %v576 = vld [vmem:[%s465 + $0x20] sm:$0xff]
        %v577 = vld [vmem:[%s465 + $0x28] sm:$0xff]
        %v578 = vld [vmem:[%s465 + $0x30] sm:$0xff]
        %v579 = vld [vmem:[%s465 + $0x38] sm:$0xff]
        %v580 = vsub.f32 %v556, %v564
        %v581 = vsub.f32 %v557, %v565
        %v582 = vsub.f32 %v558, %v566
        %v583 = vsub.f32 %v559, %v567
        %v584 = vsub.f32 %v560, %v568
        %v585 = vsub.f32 %v561, %v569
        %v586 = vsub.f32 %v562, %v570
        %v587 = vsub.f32 %v563, %v571
        %v588 = vand.u32 2147483647, %v580
        %v589 = vand.u32 2147483647, %v581
        %v590 = vand.u32 2147483647, %v582
        %v591 = vand.u32 2147483647, %v583
        %v592 = vand.u32 2147483647, %v584
        %v593 = vand.u32 2147483647, %v585
        %v594 = vand.u32 2147483647, %v586
        %v595 = vand.u32 2147483647, %v587
        %vm596 = vcmp.lt.f32.partialorder %v588, 0.11111111
        %vm597 = vcmp.lt.f32.partialorder %v589, 0.11111111
        %vm598 = vcmp.lt.f32.partialorder %v590, 0.11111111
        %vm599 = vcmp.lt.f32.partialorder %v591, 0.11111111
        %vm600 = vcmp.lt.f32.partialorder %v592, 0.11111111
        %vm601 = vcmp.lt.f32.partialorder %v593, 0.11111111
        %vm602 = vcmp.lt.f32.partialorder %v594, 0.11111111
        %vm603 = vcmp.lt.f32.partialorder %v595, 0.11111111
        %v604 = vmul.f32 %v588, 4.5
        %v605 = vmul.f32 %v589, 4.5
        %v606 = vmul.f32 %v590, 4.5
        %v607 = vmul.f32 %v591, 4.5
        %v608 = vmul.f32 %v592, 4.5
        %v609 = vmul.f32 %v593, 4.5
        %v610 = vmul.f32 %v594, 4.5
        %v611 = vmul.f32 %v595, 4.5
        %v612 = vmul.f32 %v604, %v588
        %v613 = vmul.f32 %v605, %v589
        %v614 = vmul.f32 %v606, %v590
        %v615 = vmul.f32 %v607, %v591
        %v616 = vmul.f32 %v608, %v592
        %v617 = vmul.f32 %v609, %v593
        %v618 = vmul.f32 %v610, %v594
        %v619 = vmul.f32 %v611, %v595
        %v620 = vsub.f32 %v588, 0.055555556
        %v621 = vsub.f32 %v589, 0.055555556
        %v622 = vsub.f32 %v590, 0.055555556
        %v623 = vsub.f32 %v591, 0.055555556
        %v624 = vsub.f32 %v592, 0.055555556
        %v625 = vsub.f32 %v593, 0.055555556
        %v626 = vsub.f32 %v594, 0.055555556
        %v627 = vsub.f32 %v595, 0.055555556
        %v628 = vsel %vm596, %v612, %v620
        %v629 = vsel %vm597, %v613, %v621
        %v630 = vsel %vm598, %v614, %v622
        %v631 = vsel %vm599, %v615, %v623
        %v632 = vsel %vm600, %v616, %v624
        %v633 = vsel %vm601, %v617, %v625
        %v634 = vsel %vm602, %v618, %v626
        %v635 = vsel %vm603, %v619, %v627
        %v636 = vld [vmem:[#allocation3] sm:$0xff]
        %v637 = vmul.f32 %v628, %v572
        %v638 = vmul.f32 %v629, %v573
        %v639 = vmul.f32 %v630, %v574
        %v640 = vmul.f32 %v631, %v575
        %v641 = vmul.f32 %v632, %v576
        %v642 = vmul.f32 %v633, %v577
        %v643 = vmul.f32 %v634, %v578
        %v644 = vmul.f32 %v635, %v579
        %v645 = vadd.f32 %v637, %v638
        %v646 = vadd.f32 %v645, %v639
        %v647 = vadd.f32 %v646, %v640
        %v648 = vadd.f32 %v647, %v641
        %v649 = vadd.f32 %v648, %v642
        %v650 = vadd.f32 %v649, %v643
        %v651 = vadd.f32 %v650, %v644
        %v652 = vadd.f32 %v636, %v651
        %653 = vst [vmem:[#allocation3] sm:$0xff] %v652
        %v654 = vld [vmem:[#allocation4] sm:$0xff]
        %vm655 = vcmp.gt.f32.partialorder %v572, 0.0
        %vm656 = vcmp.gt.f32.partialorder %v573, 0.0
        %vm657 = vcmp.gt.f32.partialorder %v574, 0.0
        %vm658 = vcmp.gt.f32.partialorder %v575, 0.0
        %vm659 = vcmp.gt.f32.partialorder %v576, 0.0
        %vm660 = vcmp.gt.f32.partialorder %v577, 0.0
        %vm661 = vcmp.gt.f32.partialorder %v578, 0.0
        %vm662 = vcmp.gt.f32.partialorder %v579, 0.0
        %v663 = vsel %vm655, 1.0, 0.0
        %v664 = vsel %vm656, 1.0, 0.0
        %v665 = vsel %vm657, 1.0, 0.0
        %v666 = vsel %vm658, 1.0, 0.0
        %v667 = vsel %vm659, 1.0, 0.0
        %v668 = vsel %vm660, 1.0, 0.0
        %v669 = vsel %vm661, 1.0, 0.0
        %v670 = vsel %vm662, 1.0, 0.0
        %v671 = vadd.f32 %v663, %v664
        %v672 = vadd.f32 %v671, %v665
        %v673 = vadd.f32 %v672, %v666
        %v674 = vadd.f32 %v673, %v667
        %v675 = vadd.f32 %v674, %v668
        %v676 = vadd.f32 %v675, %v669
        %v677 = vadd.f32 %v676, %v670
        %v678 = vadd.f32 %v654, %v677
        %679 = vst [vmem:[#allocation4] sm:$0xff] %v678
        // Predicated region
        $region73: #{tpu_custom_call.1} parent=43 // pred_check
          %p680 = pneg %p525
        $region74: #{tpu_custom_call.1} parent=43 // pred_check_branch
          %682 = sbr.rel (%p680) target = $region76
        $region75: #{tpu_custom_call.1} parent=43 // pred_region
          %v683 = vld [vmem:[#allocation2] sm:$0xff]
          %684 = vadd.xlane.f32.xlu0 %v683
          %v685 = vpop.xlane.xlu0 %684
          %v686 = vrot.slane %v685, 4
          %v687 = vadd.f32 %v685, %v686
          %v688 = vrot.slane %v687, 2
          %v689 = vadd.f32 %v687, %v688
          %v690 = vrot.slane %v689, 1
          %v691 = vadd.f32 %v689, %v690
          %s692 = vtos %v691
          %v693 = vld [vmem:[#allocation3] sm:$0xff]
          %694 = vadd.xlane.f32.xlu0 %v693
          %v695 = vpop.xlane.xlu0 %694
          %v696 = vrot.slane %v695, 4
          %v697 = vadd.f32 %v695, %v696
          %v698 = vrot.slane %v697, 2
          %v699 = vadd.f32 %v697, %v698
          %v700 = vrot.slane %v699, 1
          %v701 = vadd.f32 %v699, %v700
          %s702 = vtos %v701
          %v703 = vld [vmem:[#allocation4] sm:$0xff]
          %704 = vadd.xlane.f32.xlu0 %v703
          %v705 = vpop.xlane.xlu0 %704
          %v706 = vrot.slane %v705, 4
          %v707 = vadd.f32 %v705, %v706
          %v708 = vrot.slane %v707, 2
          %v709 = vadd.f32 %v707, %v708
          %v710 = vrot.slane %v709, 1
          %v711 = vadd.f32 %v709, %v710
          %s712 = vtos %v711
          %v713 = vlaneseq
          %v714 = vshrl.u32 %v713, 7
          %vm715 = vcmp.eq.s32.totalorder %v714, 0
          %v716 = vstv %s692
          %v717 = vsel %vm715, %v716, 0.0
          %vm718 = vcmp.eq.s32.totalorder %v714, 1
          %v719 = vstv %s702
          %v720 = vsel %vm718, %v719, 0.0
          %v721 = vadd.f32 %v717, %v720
          %vm722 = vcmp.eq.s32.totalorder %v714, 2
          %v723 = vstv %s712
          %v724 = vsel %vm722, %v723, 0.0
          %v725 = vadd.f32 %v721, %v724
          %726 = vst [vmem:[%s518] sm:$0xff] %v725
        $region76: #{tpu_custom_call.1} parent=43 // pred_fallthru
          _
        %s727 = sand.u32 %s241, 1
        %s728 = scalar_lea.sflag [#allocation7], %s727
        %s729 = sand.u32 %s241, 1
        %s730 = smul.addr %s729, 8
        %s731 = scalar_lea.vmem [#allocation16], %s730
        // Predicated region
        $region77: #{tpu_custom_call.1} parent=43 // pred_check
          %p732 = pneg %p251
        $region78: #{tpu_custom_call.1} parent=43 // pred_check_branch
          %734 = sbr.rel (%p732) target = $region80
        $region79: #{tpu_custom_call.1} parent=43 // pred_region
          %s736 = ssub.s32 128, 128
          %737 = vsyncadd %s728, %s736
          %s738 = smul.addr %s37, 2
          %s739 = sadd.s32 %s38, %s738
          %s740 = smul.addr %s739, 128
          %s741 = scalar_lea.hbm %s6, %s740
          %s743 = sshll.u32 %s731, 4
          %s744 = int_to_ptr.vmem [resolvable:$true] %s743
          %746 = dma.vmem_to_hbm [thread:$0]  %s744, 128, %s741, %s728
        $region80: #{tpu_custom_call.1} parent=43 // pred_fallthru
          _
      $region44: #{tpu_custom_call.1} parent=5 // pred_fallthru
        _
      %p747 = scmp.le.s32.totalorder 2, %s27
      // Predicated region
      $region81: #{tpu_custom_call.1} parent=5 // pred_check
        %p748 = pneg %p747
      $region82: #{tpu_custom_call.1} parent=5 // pred_check_branch
        %750 = sbr.rel (%p748) target = $region84
      $region83: #{tpu_custom_call.1} parent=5 // pred_region
        %s751 = ssub.s32 %s27, 2
        // Predicated region
        $region85: #{tpu_custom_call.1} parent=83 // pred_check
          %p752 = pneg %p257
        $region86: #{tpu_custom_call.1} parent=83 // pred_check_branch
          %754 = sbr.rel (%p752) target = $region88
        $region87: #{tpu_custom_call.1} parent=83 // pred_region
          %s755 = sand.u32 %s242, 1
          %s756 = scalar_lea.sflag [#allocation7], %s755
          %s757 = sand.u32 %s242, 1
          %s758 = smul.addr %s757, 8
          %s759 = scalar_lea.vmem [#allocation16], %s758
          %760 = dma.done %s756, 128
        $region88: #{tpu_custom_call.1} parent=83 // pred_fallthru
          _
      $region84: #{tpu_custom_call.1} parent=5 // pred_fallthru
        _
    $region6: #{tpu_custom_call.1} parent=1 // loop_footer
      %s31 = sadd.s32 1, %s27
    $region7: #{tpu_custom_call.1} parent=1 // loop_footer_branch
      %26 = sbr.rel target = $region3
    $region8: #{tpu_custom_call.1} parent=1 // loop_exit
      _
    %761 = vsyncpa [#allocation6], 1
    %s762 = scalar_lea.sflag [#allocation6], 1
    %763 = vsyncpa %s762, 1
    %764 = vsyncpa [#allocation9], 1
    %s765 = scalar_lea.sflag [#allocation9], 1
    %766 = vsyncpa %s765, 1
    %767 = vsyncpa [#allocation12], 1
    %s768 = scalar_lea.sflag [#allocation12], 1
    %769 = vsyncpa %s768, 1
    %770 = vsyncpa [#allocation15], 1
    %s771 = scalar_lea.sflag [#allocation15], 1
    %772 = vsyncpa %s771, 1
    %773 = vsyncpa [#allocation7], 1
    %s774 = scalar_lea.sflag [#allocation7], 1
    %775 = vsyncpa %s774, 1

</llo_original>
